<compile_context>
chip_gen: v6e
topology: v6e:2x2x1
jax: 0.10.0
libtpu: 0.0.40
codegen_flags: <defaults>
</compile_context>

<pallas_src>
from functools import partial

import jax
import jax.numpy as jnp
from jax.experimental import pallas as pl
from jax.experimental.pallas import tpu as pltpu


def _round_up(x, m):
    return (x + m - 1) // m * m


def _sublane_multiple(itemsize):
    # Minimal second-to-last block multiple per dtype packing (f32/bf16/int8).
    return {4: 8, 2: 16, 1: 32}.get(itemsize, 8)


def _pick_token_tile(n_tokens, batch, dim, itemsize, budget_bytes):
    """Largest dtype-aligned token tile that divides N and fits the VMEM budget.

    Budget covers the double-buffered (2x) input streams of all 3 modalities.
    """
    multiple = _sublane_multiple(itemsize)
    per_token = 2 * 3 * batch * dim * itemsize
    cap = max(multiple, int(budget_bytes // max(per_token, 1)))
    tile = min(n_tokens, cap)
    tile -= tile % multiple
    while tile >= multiple and n_tokens % tile:
        tile -= multiple
    if tile < multiple or n_tokens % tile:
        tile = n_tokens            # full-extent block is always legal
    return tile


# ---------------------------------------------------------------------------
# Pallas kernel: token-mean pooling + (optional) BatchNorm1d + 3 Linear heads
# ---------------------------------------------------------------------------
def avclassifier_kernel(xi_ref, xa_ref, xf_ref,
                        wi_ref, wa_ref, wf_ref,
                        bi_ref, ba_ref, bf_ref,
                        oi_ref, oa_ref, of_ref,
                        acc_i, acc_a, acc_f,
                        *, inv_n, input_norm, eps):
    # x*_ref : (B, token_tile, D)   token-feature tile (bf16 or f32)
    # w*_ref : (D, C_pad)           pre-transposed, zero-padded head weight
    # b*_ref : (1, C_pad)           head bias
    # o*_ref : (B, C_pad)           logits (lane-dense, padded classes)
    # acc_*  : (B, D) f32           token-sum accumulator (VMEM scratch)
    t = pl.program_id(0)
    x_refs = (xi_ref, xa_ref, xf_ref)
    accs = (acc_i, acc_a, acc_f)

    @pl.when(t == 0)
    def _():
        for a in accs:
            a[...] = jnp.zeros_like(a)

    # Accumulate the token-axis partial sum for this tile (f32 accumulation;
    # the bf16 -> f32 cast is VPU work hidden under the DMA).
    for x_ref, a in zip(x_refs, accs):
        a[...] += jnp.sum(x_ref[...].astype(jnp.float32), axis=1)

    @pl.when(t == pl.num_programs(0) - 1)
    def _():
        for a, w_ref, b_ref, o_ref in zip(accs,
                                          (wi_ref, wa_ref, wf_ref),
                                          (bi_ref, ba_ref, bf_ref),
                                          (oi_ref, oa_ref, of_ref)):
            pooled = a[...] * inv_n                       # token MEAN (B, D)
            if input_norm:
                # nn.BatchNorm1d(affine=False, eps), training-mode batch stats
                # (biased variance), applied to the MEAN (exact semantics).
                mu = jnp.mean(pooled, axis=0, keepdims=True)
                centered = pooled - mu
                var = jnp.mean(centered * centered, axis=0, keepdims=True)
                pooled = centered * jax.lax.rsqrt(var + eps)
            # Block-diagonal head: one small MXU dot per modality.
            o_ref[...] = (jnp.dot(pooled, w_ref[...],
                                  preferred_element_type=jnp.float32)
                          + b_ref[...]).astype(o_ref.dtype)


def avclassifier_heads(x_image, x_audio, x_fusion, params, *, input_norm=False,
                       eps=1e-6, token_tile=None,
                       vmem_limit_bytes=48 * 1024 * 1024):
    """Token-mean pooling + optional BN + three Linear heads, one Pallas call.

    x_* : (B, N, D) token features (bf16 or f32).  params["w_*"] are PyTorch
    (C, D) weights, params["b_*"] are (C,) biases.  Returns three (B, C) logits.
    """
    B, N, D = x_image.shape
    assert x_audio.shape == (B, N, D) and x_fusion.shape == (B, N, D)
    C = params["w_image"].shape[0]
    C_pad = _round_up(C, 128)

    itemsize = jnp.dtype(x_image.dtype).itemsize
    multiple = _sublane_multiple(itemsize)
    if token_tile is None:
        # Leave ~half the VMEM limit for weights/bias/output/accumulators.
        token_tile = _pick_token_tile(N, B, D, itemsize, vmem_limit_bytes // 2)
    assert token_tile == N or (token_tile % multiple == 0 and N % token_tile == 0), \
        "token_tile must equal N or be a dtype-aligned multiple dividing N"
    num_tiles = N // token_tile

    def pad_w(w):   # PyTorch (C, D) -> pre-transposed, lane-padded (D, C_pad)
        return jnp.pad(jnp.transpose(w).astype(jnp.float32),
                       ((0, 0), (0, C_pad - C)))

    def pad_b(b):   # (C,) / (1, C) -> (1, C_pad)
        return jnp.pad(jnp.reshape(b, (1, -1)).astype(jnp.float32),
                       ((0, 0), (0, C_pad - C)))

    x_spec = pl.BlockSpec((B, token_tile, D), lambda t: (0, t, 0))
    w_spec = pl.BlockSpec((D, C_pad), lambda t: (0, 0))
    b_spec = pl.BlockSpec((1, C_pad), lambda t: (0, 0))
    o_spec = pl.BlockSpec((B, C_pad), lambda t: (0, 0))
    o_shape = jax.ShapeDtypeStruct((B, C_pad), jnp.float32)

    kernel = partial(avclassifier_kernel, inv_n=1.0 / float(N),
                     input_norm=input_norm, eps=float(eps))

    out_i, out_a, out_f = pl.pallas_call(
        kernel,
        out_shape=(o_shape, o_shape, o_shape),
        grid_spec=pltpu.PrefetchScalarGridSpec(
            num_scalar_prefetch=0,
            grid=(num_tiles,),                             # token-axis reduction
            in_specs=[x_spec, x_spec, x_spec,
                      w_spec, w_spec, w_spec,
                      b_spec, b_spec, b_spec],
            out_specs=(o_spec, o_spec, o_spec),
            scratch_shapes=[pltpu.VMEM((B, D), jnp.float32),
                            pltpu.VMEM((B, D), jnp.float32),
                            pltpu.VMEM((B, D), jnp.float32)],
        ),
        compiler_params=pltpu.CompilerParams(
            dimension_semantics=("arbitrary",),
            vmem_limit_bytes=vmem_limit_bytes),
    )(x_image, x_audio, x_fusion,
      pad_w(params["w_image"]), pad_w(params["w_audio"]), pad_w(params["w_fusion"]),
      pad_b(params["b_image"]), pad_b(params["b_audio"]), pad_b(params["b_fusion"]))

    # Slice the real class columns back out of the lane-padded outputs.
    return out_i[:, :C], out_a[:, :C], out_f[:, :C]


# ---------------------------------------------------------------------------
# Deterministic synthetic "encoder" (plain JAX glue).
# TODO(synk): the real encoder is an external module passed to __init__; it is
#             replaced here by a deterministic linear token embedder.
# ---------------------------------------------------------------------------
def synthetic_encoder(image, audio, enc_params, num_tokens, embed_dim):
    B = image.shape[0]
    img_flat = image.reshape(B, -1).astype(jnp.float32)
    aud_flat = audio.reshape(B, -1).astype(jnp.float32)
    x_image = (img_flat @ enc_params["We_img"]).reshape(B, num_tokens, embed_dim)
    x_audio = (aud_flat @ enc_params["We_aud"]).reshape(B, num_tokens, embed_dim)
    x_fusion = 0.5 * (x_image + x_audio)
    # Encoder emits bf16 tokens: halves HBM bytes streamed by the mem-bound
    # pooling kernel; all downstream math is f32 inside the kernel.
    return (x_image.astype(jnp.bfloat16),
            x_audio.astype(jnp.bfloat16),
            x_fusion.astype(jnp.bfloat16))


def xavier_uniform(key, shape):
    fan_out, fan_in = shape
    bound = (6.0 / (fan_in + fan_out)) ** 0.5
    return jax.random.uniform(key, shape, jnp.float32, -bound, bound)


# ---------------------------------------------------------------------------
# Reference (pure JAX) for correctness checking
# ---------------------------------------------------------------------------
def reference_forward(x_image, x_audio, x_fusion, params, input_norm=False,
                      eps=1e-6):
    def head(x, w, b):
        p = jnp.mean(x.astype(jnp.float32), axis=1)
        if input_norm:
            mu = jnp.mean(p, axis=0, keepdims=True)
            var = jnp.mean((p - mu) ** 2, axis=0, keepdims=True)
            p = (p - mu) / jnp.sqrt(var + eps)
        return (jnp.dot(p, jnp.transpose(w).astype(jnp.float32),
                        precision=jax.lax.Precision.HIGHEST)
                + jnp.reshape(b, (1, -1)))

    return (
        head(x_image, params["w_image"], params["b_image"]),
        head(x_audio, params["w_audio"], params["b_audio"]),
        head(x_fusion, params["w_fusion"], params["b_fusion"]),
    )


if __name__ == "__main__":
    # Small shapes consistent with the module's forward.
    B = 2                      # batch
    C_IMG, H, W = 4, 16, 16    # image NCHW
    C_AUD = 1                  # audio NCHW (e.g. spectrogram)
    NUM_TOKENS = 8
    EMBED_DIM = 32
    NUM_CLASSES = 10

    key = jax.random.PRNGKey(0)
    k_img, k_aud, k_ei, k_ea, k_wi, k_wa, k_wf = jax.random.split(key, 7)

    image = jax.random.normal(k_img, (B, C_IMG, H, W), jnp.float32)
    audio = jax.random.normal(k_aud, (B, C_AUD, H, W), jnp.float32)

    enc_params = {
        "We_img": 0.02 * jax.random.normal(
            k_ei, (C_IMG * H * W, NUM_TOKENS * EMBED_DIM), jnp.float32),
        "We_aud": 0.02 * jax.random.normal(
            k_ea, (C_AUD * H * W, NUM_TOKENS * EMBED_DIM), jnp.float32),
    }

    # Head parameters: xavier_uniform weights, zero biases
    # (as in AVClassifier.initialize_weights), PyTorch (C, D) convention.
    params = {
        "w_image": xavier_uniform(k_wi, (NUM_CLASSES, EMBED_DIM)),
        "b_image": jnp.zeros((NUM_CLASSES,), jnp.float32),
        "w_audio": xavier_uniform(k_wa, (NUM_CLASSES, EMBED_DIM)),
        "b_audio": jnp.zeros((NUM_CLASSES,), jnp.float32),
        "w_fusion": xavier_uniform(k_wf, (NUM_CLASSES, EMBED_DIM)),
        "b_fusion": jnp.zeros((NUM_CLASSES,), jnp.float32),
    }

    # Encoder (plain JAX glue) -> bf16 token features (B, N, D)
    x_image, x_audio, x_fusion = synthetic_encoder(
        image, audio, enc_params, NUM_TOKENS, EMBED_DIM)

    # TODO(synk): BatchNorm1d running-stat updates (training-time side effect)
    #             and freeze_encoder (autograd-only) have no forward effect and
    #             are not modeled.
    for INPUT_NORM in (True, False):
        preds = avclassifier_heads(
            x_image, x_audio, x_fusion, params, input_norm=INPUT_NORM)
        preds = jax.block_until_ready(preds)

        refs = reference_forward(
            x_image, x_audio, x_fusion, params, input_norm=INPUT_NORM)
        for p, r in zip(preds, refs):
            assert p.shape == (B, NUM_CLASSES)
            err = float(jnp.max(jnp.abs(p - r)))
            assert jnp.allclose(p, r, atol=2e-3, rtol=2e-3), \
                f"mismatch (input_norm={INPUT_NORM}): max abs err {err}"

    print("KERNEL_OK")
</pallas_src>

<mosaic_0001>
module attributes {stable_mosaic.version = 11 : i64} {
  func.func @avclassifier_kernel(%arg0: i32, %arg1: memref<2x8x32xbf16, #tpu.memory_space<vmem>>, %arg2: memref<2x8x32xbf16, #tpu.memory_space<vmem>>, %arg3: memref<2x8x32xbf16, #tpu.memory_space<vmem>>, %arg4: memref<32x128xf32, #tpu.memory_space<vmem>>, %arg5: memref<32x128xf32, #tpu.memory_space<vmem>>, %arg6: memref<32x128xf32, #tpu.memory_space<vmem>>, %arg7: memref<1x128xf32, #tpu.memory_space<vmem>>, %arg8: memref<1x128xf32, #tpu.memory_space<vmem>>, %arg9: memref<1x128xf32, #tpu.memory_space<vmem>>, %arg10: memref<2x128xf32, #tpu.memory_space<vmem>>, %arg11: memref<2x128xf32, #tpu.memory_space<vmem>>, %arg12: memref<2x128xf32, #tpu.memory_space<vmem>>, %arg13: memref<2x32xf32, #tpu.memory_space<vmem>>, %arg14: memref<2x32xf32, #tpu.memory_space<vmem>>, %arg15: memref<2x32xf32, #tpu.memory_space<vmem>>) attributes {dimension_semantics = [#tpu.dimension_semantics<arbitrary>], iteration_bounds = array<i64: 1>, scalar_prefetch = 0 : i64, scratch_operands = 3 : i64, tpu.core_type = #tpu.core_type<tc>, window_params = [{transform_indices = @transform_0, window_bounds = array<i64: 2, 8, 32>}, {transform_indices = @transform_1, window_bounds = array<i64: 2, 8, 32>}, {transform_indices = @transform_2, window_bounds = array<i64: 2, 8, 32>}, {pipeline_mode = #tpu.pipeline_mode<synchronous>, transform_indices = @transform_3, window_bounds = array<i64: 32, 128>}, {pipeline_mode = #tpu.pipeline_mode<synchronous>, transform_indices = @transform_4, window_bounds = array<i64: 32, 128>}, {pipeline_mode = #tpu.pipeline_mode<synchronous>, transform_indices = @transform_5, window_bounds = array<i64: 32, 128>}, {pipeline_mode = #tpu.pipeline_mode<synchronous>, transform_indices = @transform_6, window_bounds = array<i64: 1, 128>}, {pipeline_mode = #tpu.pipeline_mode<synchronous>, transform_indices = @transform_7, window_bounds = array<i64: 1, 128>}, {pipeline_mode = #tpu.pipeline_mode<synchronous>, transform_indices = @transform_8, window_bounds = array<i64: 1, 128>}, {pipeline_mode = #tpu.pipeline_mode<synchronous>, transform_indices = @transform_9, window_bounds = array<i64: 2, 128>}, {pipeline_mode = #tpu.pipeline_mode<synchronous>, transform_indices = @transform_10, window_bounds = array<i64: 2, 128>}, {pipeline_mode = #tpu.pipeline_mode<synchronous>, transform_indices = @transform_11, window_bounds = array<i64: 2, 128>}]} {
    %c0_i32 = arith.constant 0 : i32
    %0 = arith.cmpi eq, %arg0, %c0_i32 : i32
    %1 = arith.extui %0 : i1 to i32
    %c0_i32_0 = arith.constant 0 : i32
    %2 = arith.cmpi ne, %1, %c0_i32_0 : i32
    scf.if %2 {
      %cst_25 = arith.constant 0.000000e+00 : f32
      %24 = vector.broadcast %cst_25 : f32 to vector<2x32xf32>
      %c0_26 = arith.constant 0 : index
      %c0_27 = arith.constant 0 : index
      %25 = vector.load %arg13[%c0_26, %c0_27] : memref<2x32xf32, #tpu.memory_space<vmem>>, vector<2x32xf32>
      tpu.vector_store %arg13[%c0_26, %c0_27], %24 {strides = array<i32>} : memref<2x32xf32, #tpu.memory_space<vmem>>, vector<2x32xf32>,
      %cst_28 = arith.constant 0.000000e+00 : f32
      %26 = vector.broadcast %cst_28 : f32 to vector<2x32xf32>
      %c0_29 = arith.constant 0 : index
      %c0_30 = arith.constant 0 : index
      %27 = vector.load %arg14[%c0_29, %c0_30] : memref<2x32xf32, #tpu.memory_space<vmem>>, vector<2x32xf32>
      tpu.vector_store %arg14[%c0_29, %c0_30], %26 {strides = array<i32>} : memref<2x32xf32, #tpu.memory_space<vmem>>, vector<2x32xf32>,
      %cst_31 = arith.constant 0.000000e+00 : f32
      %28 = vector.broadcast %cst_31 : f32 to vector<2x32xf32>
      %c0_32 = arith.constant 0 : index
      %c0_33 = arith.constant 0 : index
      %29 = vector.load %arg15[%c0_32, %c0_33] : memref<2x32xf32, #tpu.memory_space<vmem>>, vector<2x32xf32>
      tpu.vector_store %arg15[%c0_32, %c0_33], %28 {strides = array<i32>} : memref<2x32xf32, #tpu.memory_space<vmem>>, vector<2x32xf32>,
    } else {
    }
    %c0 = arith.constant 0 : index
    %c0_1 = arith.constant 0 : index
    %3 = vector.load %arg13[%c0, %c0_1] : memref<2x32xf32, #tpu.memory_space<vmem>>, vector<2x32xf32>
    %c0_2 = arith.constant 0 : index
    %c0_3 = arith.constant 0 : index
    %c0_4 = arith.constant 0 : index
    %4 = vector.load %arg1[%c0_2, %c0_3, %c0_4] : memref<2x8x32xbf16, #tpu.memory_space<vmem>>, vector<2x8x32xbf16>
    %5 = arith.extf %4 : vector<2x8x32xbf16> to vector<2x8x32xf32>
    %cst = arith.constant dense<0.000000e+00> : vector<2x32xf32>
    %6 = vector.multi_reduction <add>, %5, %cst [1] : vector<2x8x32xf32> to vector<2x32xf32>
    %7 = arith.addf %3, %6 : vector<2x32xf32>
    %c0_5 = arith.constant 0 : index
    %c0_6 = arith.constant 0 : index
    %8 = vector.load %arg13[%c0_5, %c0_6] : memref<2x32xf32, #tpu.memory_space<vmem>>, vector<2x32xf32>
    tpu.vector_store %arg13[%c0_5, %c0_6], %7 {strides = array<i32>} : memref<2x32xf32, #tpu.memory_space<vmem>>, vector<2x32xf32>,
    %c0_7 = arith.constant 0 : index
    %c0_8 = arith.constant 0 : index
    %9 = vector.load %arg14[%c0_7, %c0_8] : memref<2x32xf32, #tpu.memory_space<vmem>>, vector<2x32xf32>
    %c0_9 = arith.constant 0 : index
    %c0_10 = arith.constant 0 : index
    %c0_11 = arith.constant 0 : index
    %10 = vector.load %arg2[%c0_9, %c0_10, %c0_11] : memref<2x8x32xbf16, #tpu.memory_space<vmem>>, vector<2x8x32xbf16>
    %11 = arith.extf %10 : vector<2x8x32xbf16> to vector<2x8x32xf32>
    %cst_12 = arith.constant dense<0.000000e+00> : vector<2x32xf32>
    %12 = vector.multi_reduction <add>, %11, %cst_12 [1] : vector<2x8x32xf32> to vector<2x32xf32>
    %13 = arith.addf %9, %12 : vector<2x32xf32>
    %c0_13 = arith.constant 0 : index
    %c0_14 = arith.constant 0 : index
    %14 = vector.load %arg14[%c0_13, %c0_14] : memref<2x32xf32, #tpu.memory_space<vmem>>, vector<2x32xf32>
    tpu.vector_store %arg14[%c0_13, %c0_14], %13 {strides = array<i32>} : memref<2x32xf32, #tpu.memory_space<vmem>>, vector<2x32xf32>,
    %c0_15 = arith.constant 0 : index
    %c0_16 = arith.constant 0 : index
    %15 = vector.load %arg15[%c0_15, %c0_16] : memref<2x32xf32, #tpu.memory_space<vmem>>, vector<2x32xf32>
    %c0_17 = arith.constant 0 : index
    %c0_18 = arith.constant 0 : index
    %c0_19 = arith.constant 0 : index
    %16 = vector.load %arg3[%c0_17, %c0_18, %c0_19] : memref<2x8x32xbf16, #tpu.memory_space<vmem>>, vector<2x8x32xbf16>
    %17 = arith.extf %16 : vector<2x8x32xbf16> to vector<2x8x32xf32>
    %cst_20 = arith.constant dense<0.000000e+00> : vector<2x32xf32>
    %18 = vector.multi_reduction <add>, %17, %cst_20 [1] : vector<2x8x32xf32> to vector<2x32xf32>
    %19 = arith.addf %15, %18 : vector<2x32xf32>
    %c0_21 = arith.constant 0 : index
    %c0_22 = arith.constant 0 : index
    %20 = vector.load %arg15[%c0_21, %c0_22] : memref<2x32xf32, #tpu.memory_space<vmem>>, vector<2x32xf32>
    tpu.vector_store %arg15[%c0_21, %c0_22], %19 {strides = array<i32>} : memref<2x32xf32, #tpu.memory_space<vmem>>, vector<2x32xf32>,
    %c0_i32_23 = arith.constant 0 : i32
    %21 = arith.cmpi eq, %arg0, %c0_i32_23 : i32
    %22 = arith.extui %21 : i1 to i32
    %c0_i32_24 = arith.constant 0 : i32
    %23 = arith.cmpi ne, %22, %c0_i32_24 : i32
    scf.if %23 {
      %c0_25 = arith.constant 0 : index
      %c0_26 = arith.constant 0 : index
      %24 = vector.load %arg13[%c0_25, %c0_26] : memref<2x32xf32, #tpu.memory_space<vmem>>, vector<2x32xf32>
      %cst_27 = arith.constant 1.250000e-01 : f32
      %25 = vector.broadcast %cst_27 : f32 to vector<2x32xf32>
      %26 = arith.mulf %24, %25 : vector<2x32xf32>
      %cst_28 = arith.constant dense<0.000000e+00> : vector<32xf32>
      %27 = vector.multi_reduction <add>, %26, %cst_28 [0] : vector<2x32xf32> to vector<32xf32>
      %28 = vector.shape_cast %27 : vector<32xf32> to vector<1x32xf32>
      %cst_29 = arith.constant 2.000000e+00 : f32
      %29 = vector.broadcast %cst_29 : f32 to vector<1x32xf32>
      %30 = arith.divf %28, %29 : vector<1x32xf32>
      %31 = vector.broadcast %30 : vector<1x32xf32> to vector<2x32xf32>
      %32 = arith.subf %26, %31 : vector<2x32xf32>
      %33 = arith.mulf %32, %32 : vector<2x32xf32>
      %cst_30 = arith.constant dense<0.000000e+00> : vector<32xf32>
      %34 = vector.multi_reduction <add>, %33, %cst_30 [0] : vector<2x32xf32> to vector<32xf32>
      %35 = vector.shape_cast %34 : vector<32xf32> to vector<1x32xf32>
      %cst_31 = arith.constant 2.000000e+00 : f32
      %36 = vector.broadcast %cst_31 : f32 to vector<1x32xf32>
      %37 = arith.divf %35, %36 : vector<1x32xf32>
      %cst_32 = arith.constant 9.99999997E-7 : f32
      %38 = vector.broadcast %cst_32 : f32 to vector<1x32xf32>
      %39 = arith.addf %37, %38 : vector<1x32xf32>
      %40 = math.rsqrt %39 : vector<1x32xf32>
      %41 = vector.broadcast %40 : vector<1x32xf32> to vector<2x32xf32>
      %42 = arith.mulf %32, %41 : vector<2x32xf32>
      %c0_33 = arith.constant 0 : index
      %c0_34 = arith.constant 0 : index
      %43 = vector.load %arg4[%c0_33, %c0_34] : memref<32x128xf32, #tpu.memory_space<vmem>>, vector<32x128xf32>
      %cst_35 = arith.constant dense<0.000000e+00> : vector<2x128xf32>
      %44 = tpu.matmul %42, %43, %cst_35 {dimension_numbers = #tpu.dot_dimension_numbers<[1], [0], [0], [1], [0, 0, 1, 1], [], []>} : vector<2x32xf32>, vector<32x128xf32>, vector<2x128xf32> -> vector<2x128xf32>
      %c0_36 = arith.constant 0 : index
      %c0_37 = arith.constant 0 : index
      %45 = vector.load %arg7[%c0_36, %c0_37] : memref<1x128xf32, #tpu.memory_space<vmem>>, vector<1x128xf32>
      %46 = vector.broadcast %45 : vector<1x128xf32> to vector<2x128xf32>
      %47 = arith.addf %44, %46 : vector<2x128xf32>
      %c0_38 = arith.constant 0 : index
      %c0_39 = arith.constant 0 : index
      %48 = vector.load %arg10[%c0_38, %c0_39] : memref<2x128xf32, #tpu.memory_space<vmem>>, vector<2x128xf32>
      tpu.vector_store %arg10[%c0_38, %c0_39], %47 {strides = array<i32>} : memref<2x128xf32, #tpu.memory_space<vmem>>, vector<2x128xf32>,
      %c0_40 = arith.constant 0 : index
      %c0_41 = arith.constant 0 : index
      %49 = vector.load %arg14[%c0_40, %c0_41] : memref<2x32xf32, #tpu.memory_space<vmem>>, vector<2x32xf32>
      %cst_42 = arith.constant 1.250000e-01 : f32
      %50 = vector.broadcast %cst_42 : f32 to vector<2x32xf32>
      %51 = arith.mulf %49, %50 : vector<2x32xf32>
      %cst_43 = arith.constant dense<0.000000e+00> : vector<32xf32>
      %52 = vector.multi_reduction <add>, %51, %cst_43 [0] : vector<2x32xf32> to vector<32xf32>
      %53 = vector.shape_cast %52 : vector<32xf32> to vector<1x32xf32>
      %cst_44 = arith.constant 2.000000e+00 : f32
      %54 = vector.broadcast %cst_44 : f32 to vector<1x32xf32>
      %55 = arith.divf %53, %54 : vector<1x32xf32>
      %56 = vector.broadcast %55 : vector<1x32xf32> to vector<2x32xf32>
      %57 = arith.subf %51, %56 : vector<2x32xf32>
      %58 = arith.mulf %57, %57 : vector<2x32xf32>
      %cst_45 = arith.constant dense<0.000000e+00> : vector<32xf32>
      %59 = vector.multi_reduction <add>, %58, %cst_45 [0] : vector<2x32xf32> to vector<32xf32>
      %60 = vector.shape_cast %59 : vector<32xf32> to vector<1x32xf32>
      %cst_46 = arith.constant 2.000000e+00 : f32
      %61 = vector.broadcast %cst_46 : f32 to vector<1x32xf32>
      %62 = arith.divf %60, %61 : vector<1x32xf32>
      %cst_47 = arith.constant 9.99999997E-7 : f32
      %63 = vector.broadcast %cst_47 : f32 to vector<1x32xf32>
      %64 = arith.addf %62, %63 : vector<1x32xf32>
      %65 = math.rsqrt %64 : vector<1x32xf32>
      %66 = vector.broadcast %65 : vector<1x32xf32> to vector<2x32xf32>
      %67 = arith.mulf %57, %66 : vector<2x32xf32>
      %c0_48 = arith.constant 0 : index
      %c0_49 = arith.constant 0 : index
      %68 = vector.load %arg5[%c0_48, %c0_49] : memref<32x128xf32, #tpu.memory_space<vmem>>, vector<32x128xf32>
      %cst_50 = arith.constant dense<0.000000e+00> : vector<2x128xf32>
      %69 = tpu.matmul %67, %68, %cst_50 {dimension_numbers = #tpu.dot_dimension_numbers<[1], [0], [0], [1], [0, 0, 1, 1], [], []>} : vector<2x32xf32>, vector<32x128xf32>, vector<2x128xf32> -> vector<2x128xf32>
      %c0_51 = arith.constant 0 : index
      %c0_52 = arith.constant 0 : index
      %70 = vector.load %arg8[%c0_51, %c0_52] : memref<1x128xf32, #tpu.memory_space<vmem>>, vector<1x128xf32>
      %71 = vector.broadcast %70 : vector<1x128xf32> to vector<2x128xf32>
      %72 = arith.addf %69, %71 : vector<2x128xf32>
      %c0_53 = arith.constant 0 : index
      %c0_54 = arith.constant 0 : index
      %73 = vector.load %arg11[%c0_53, %c0_54] : memref<2x128xf32, #tpu.memory_space<vmem>>, vector<2x128xf32>
      tpu.vector_store %arg11[%c0_53, %c0_54], %72 {strides = array<i32>} : memref<2x128xf32, #tpu.memory_space<vmem>>, vector<2x128xf32>,
      %c0_55 = arith.constant 0 : index
      %c0_56 = arith.constant 0 : index
      %74 = vector.load %arg15[%c0_55, %c0_56] : memref<2x32xf32, #tpu.memory_space<vmem>>, vector<2x32xf32>
      %cst_57 = arith.constant 1.250000e-01 : f32
      %75 = vector.broadcast %cst_57 : f32 to vector<2x32xf32>
      %76 = arith.mulf %74, %75 : vector<2x32xf32>
      %cst_58 = arith.constant dense<0.000000e+00> : vector<32xf32>
      %77 = vector.multi_reduction <add>, %76, %cst_58 [0] : vector<2x32xf32> to vector<32xf32>
      %78 = vector.shape_cast %77 : vector<32xf32> to vector<1x32xf32>
      %cst_59 = arith.constant 2.000000e+00 : f32
      %79 = vector.broadcast %cst_59 : f32 to vector<1x32xf32>
      %80 = arith.divf %78, %79 : vector<1x32xf32>
      %81 = vector.broadcast %80 : vector<1x32xf32> to vector<2x32xf32>
      %82 = arith.subf %76, %81 : vector<2x32xf32>
      %83 = arith.mulf %82, %82 : vector<2x32xf32>
      %cst_60 = arith.constant dense<0.000000e+00> : vector<32xf32>
      %84 = vector.multi_reduction <add>, %83, %cst_60 [0] : vector<2x32xf32> to vector<32xf32>
      %85 = vector.shape_cast %84 : vector<32xf32> to vector<1x32xf32>
      %cst_61 = arith.constant 2.000000e+00 : f32
      %86 = vector.broadcast %cst_61 : f32 to vector<1x32xf32>
      %87 = arith.divf %85, %86 : vector<1x32xf32>
      %cst_62 = arith.constant 9.99999997E-7 : f32
      %88 = vector.broadcast %cst_62 : f32 to vector<1x32xf32>
      %89 = arith.addf %87, %88 : vector<1x32xf32>
      %90 = math.rsqrt %89 : vector<1x32xf32>
      %91 = vector.broadcast %90 : vector<1x32xf32> to vector<2x32xf32>
      %92 = arith.mulf %82, %91 : vector<2x32xf32>
      %c0_63 = arith.constant 0 : index
      %c0_64 = arith.constant 0 : index
      %93 = vector.load %arg6[%c0_63, %c0_64] : memref<32x128xf32, #tpu.memory_space<vmem>>, vector<32x128xf32>
      %cst_65 = arith.constant dense<0.000000e+00> : vector<2x128xf32>
      %94 = tpu.matmul %92, %93, %cst_65 {dimension_numbers = #tpu.dot_dimension_numbers<[1], [0], [0], [1], [0, 0, 1, 1], [], []>} : vector<2x32xf32>, vector<32x128xf32>, vector<2x128xf32> -> vector<2x128xf32>
      %c0_66 = arith.constant 0 : index
      %c0_67 = arith.constant 0 : index
      %95 = vector.load %arg9[%c0_66, %c0_67] : memref<1x128xf32, #tpu.memory_space<vmem>>, vector<1x128xf32>
      %96 = vector.broadcast %95 : vector<1x128xf32> to vector<2x128xf32>
      %97 = arith.addf %94, %96 : vector<2x128xf32>
      %c0_68 = arith.constant 0 : index
      %c0_69 = arith.constant 0 : index
      %98 = vector.load %arg12[%c0_68, %c0_69] : memref<2x128xf32, #tpu.memory_space<vmem>>, vector<2x128xf32>
      tpu.vector_store %arg12[%c0_68, %c0_69], %97 {strides = array<i32>} : memref<2x128xf32, #tpu.memory_space<vmem>>, vector<2x128xf32>,
    } else {
    }
    return
  }
  func.func @transform_0(%arg0: i32) -> (i32, i32, i32) {
    %c0_i32 = arith.constant 0 : i32
    %c0_i32_0 = arith.constant 0 : i32
    %c0_i32_1 = arith.constant 0 : i32
    return %c0_i32, %arg0, %c0_i32_0 : i32, i32, i32
  }
  func.func @transform_1(%arg0: i32) -> (i32, i32, i32) {
    %c0_i32 = arith.constant 0 : i32
    %c0_i32_0 = arith.constant 0 : i32
    %c0_i32_1 = arith.constant 0 : i32
    return %c0_i32, %arg0, %c0_i32_0 : i32, i32, i32
  }
  func.func @transform_2(%arg0: i32) -> (i32, i32, i32) {
    %c0_i32 = arith.constant 0 : i32
    %c0_i32_0 = arith.constant 0 : i32
    %c0_i32_1 = arith.constant 0 : i32
    return %c0_i32, %arg0, %c0_i32_0 : i32, i32, i32
  }
  func.func @transform_3(%arg0: i32) -> (i32, i32) {
    %c0_i32 = arith.constant 0 : i32
    %c0_i32_0 = arith.constant 0 : i32
    %c0_i32_1 = arith.constant 0 : i32
    return %c0_i32, %c0_i32_0 : i32, i32
  }
  func.func @transform_4(%arg0: i32) -> (i32, i32) {
    %c0_i32 = arith.constant 0 : i32
    %c0_i32_0 = arith.constant 0 : i32
    %c0_i32_1 = arith.constant 0 : i32
    return %c0_i32, %c0_i32_0 : i32, i32
  }
  func.func @transform_5(%arg0: i32) -> (i32, i32) {
    %c0_i32 = arith.constant 0 : i32
    %c0_i32_0 = arith.constant 0 : i32
    %c0_i32_1 = arith.constant 0 : i32
    return %c0_i32, %c0_i32_0 : i32, i32
  }
  func.func @transform_6(%arg0: i32) -> (i32, i32) {
    %c0_i32 = arith.constant 0 : i32
    %c0_i32_0 = arith.constant 0 : i32
    %c0_i32_1 = arith.constant 0 : i32
    return %c0_i32, %c0_i32_0 : i32, i32
  }
  func.func @transform_7(%arg0: i32) -> (i32, i32) {
    %c0_i32 = arith.constant 0 : i32
    %c0_i32_0 = arith.constant 0 : i32
    %c0_i32_1 = arith.constant 0 : i32
    return %c0_i32, %c0_i32_0 : i32, i32
  }
  func.func @transform_8(%arg0: i32) -> (i32, i32) {
    %c0_i32 = arith.constant 0 : i32
    %c0_i32_0 = arith.constant 0 : i32
    %c0_i32_1 = arith.constant 0 : i32
    return %c0_i32, %c0_i32_0 : i32, i32
  }
  func.func @transform_9(%arg0: i32) -> (i32, i32) {
    %c0_i32 = arith.constant 0 : i32
    %c0_i32_0 = arith.constant 0 : i32
    %c0_i32_1 = arith.constant 0 : i32
    return %c0_i32, %c0_i32_0 : i32, i32
  }
  func.func @transform_10(%arg0: i32) -> (i32, i32) {
    %c0_i32 = arith.constant 0 : i32
    %c0_i32_0 = arith.constant 0 : i32
    %c0_i32_1 = arith.constant 0 : i32
    return %c0_i32, %c0_i32_0 : i32, i32
  }
  func.func @transform_11(%arg0: i32) -> (i32, i32) {
    %c0_i32 = arith.constant 0 : i32
    %c0_i32_0 = arith.constant 0 : i32
    %c0_i32_1 = arith.constant 0 : i32
    return %c0_i32, %c0_i32_0 : i32, i32
  }
}

</mosaic_0001>

<llo_original>
// kernel: tpu_custom_call.1
$region0: #{tpu_custom_call.1}
  #allocation0 [shape = 'u32[]', space=smem, size = 0x4, offset = 0x4, fixed_abs, tag = 'smem constant byte address 0x4 - core index']
  #allocation1 [shape = 'u32[144,128]{1,0:T(1,128)}', space=vmem, size = 0x12000, scoped, tag = 'internal scratch']
  #allocation2 [shape = 'f32[2,32]{1,0:T(2,128)}', space=vmem, size = 0x400, scoped, tag = 'scratch operand']
  #allocation3 [shape = 'f32[2,32]{1,0:T(2,128)}', space=vmem, size = 0x400, scoped, tag = 'scratch operand']
  #allocation4 [shape = 'f32[2,32]{1,0:T(2,128)}', space=vmem, size = 0x400, scoped, tag = 'scratch operand']
  %s0 = inlined_call_operand.hbm [shape: bf16[2,8,32], index: 0, kind: input, shape index: {}]
  %s1 = inlined_call_operand.hbm [shape: bf16[2,8,32], index: 1, kind: input, shape index: {}]
  %s2 = inlined_call_operand.hbm [shape: bf16[2,8,32], index: 2, kind: input, shape index: {}]
  %s3 = inlined_call_operand.hbm [shape: f32[32,128], index: 3, kind: input, shape index: {}]
  %s4 = inlined_call_operand.hbm [shape: f32[32,128], index: 4, kind: input, shape index: {}]
  %s5 = inlined_call_operand.hbm [shape: f32[32,128], index: 5, kind: input, shape index: {}]
  %s6 = inlined_call_operand.vmem [shape: f32[1,128], index: 6, kind: input, shape index: {}]
  %s7 = inlined_call_operand.vmem [shape: f32[1,128], index: 7, kind: input, shape index: {}]
  %s8 = inlined_call_operand.vmem [shape: f32[1,128], index: 8, kind: input, shape index: {}]
  %s9 = inlined_call_operand.hbm [shape: f32[2,128], index: 9, kind: output, shape index: {0}]
  %s10 = inlined_call_operand.hbm [shape: f32[2,128], index: 10, kind: output, shape index: {1}]
  %s11 = inlined_call_operand.hbm [shape: f32[2,128], index: 11, kind: output, shape index: {2}]
  %12 = xla_tuple %s9, %s10, %s11
  %s13 = sld [smem:[#allocation0]]
  $region94: #{tpu_custom_call.1} parent=0
    _
  %s15 = ssub.s32 1, %s13
  %s16 = scalar_select 0, %s15, %s13
  $region1: #{tpu_custom_call.1} parent=0
    #allocation5 [shape = 'u8[4096]{0}', space=vmem, size = 0x1000, scoped, tag = 'input window, operand 0, single buffered']
    #allocation6 [shape = 's32[1]{0}', space=sflag, size = 0x4, scoped, tag = 'scoped memory for tpu_custom_call.1']
    #allocation7 [shape = 's32[1]{0}', space=sflag, size = 0x4, scoped, tag = 'scoped memory for tpu_custom_call.1']
    #allocation8 [shape = 'u8[4096]{0}', space=vmem, size = 0x1000, scoped, tag = 'input window, operand 1, single buffered']
    #allocation9 [shape = 's32[1]{0}', space=sflag, size = 0x4, scoped, tag = 'scoped memory for tpu_custom_call.1']
    #allocation10 [shape = 'u8[4096]{0}', space=vmem, size = 0x1000, scoped, tag = 'input window, operand 2, single buffered']
    #allocation11 [shape = 'u8[16384]{0}', space=vmem, size = 0x4000, scoped, tag = 'input window, operand 3, single buffered']
    #allocation12 [shape = 's32[1]{0}', space=sflag, size = 0x4, scoped, tag = 'scoped memory for tpu_custom_call.1']
    #allocation13 [shape = 'u8[16384]{0}', space=vmem, size = 0x4000, scoped, tag = 'input window, operand 4, single buffered']
    #allocation14 [shape = 'u8[16384]{0}', space=vmem, size = 0x4000, scoped, tag = 'input window, operand 5, single buffered']
    #allocation15 [shape = 's32[1]{0}', space=sflag, size = 0x4, scoped, tag = 'scoped memory for tpu_custom_call.1']
    #allocation16 [shape = 'u8[1024]{0}', space=vmem, size = 0x400, scoped, tag = 'output window, operand 0, single buffered']
    #allocation17 [shape = 'u8[1024]{0}', space=vmem, size = 0x400, scoped, tag = 'output window, operand 1, single buffered']
    #allocation18 [shape = 's32[1]{0}', space=sflag, size = 0x4, scoped, tag = 'scoped memory for tpu_custom_call.1']
    #allocation19 [shape = 'u8[1024]{0}', space=vmem, size = 0x400, scoped, tag = 'output window, operand 2, single buffered']
    %17 = vsyncpa [#allocation6], 0
    %18 = vsyncpa [#allocation9], 0
    %19 = vsyncpa [#allocation12], 0
    %20 = vsyncpa [#allocation15], 0
    %21 = vsyncpa [#allocation7], 0
    %22 = vsyncpa [#allocation18], 0
    // Predicated region
    $region2: #{tpu_custom_call.1} parent=1 // pred_check
      _
    $region3: #{tpu_custom_call.1} parent=1 // pred_check_branch
      %24 = sbr.rel (0) target = $region5
    $region4: #{tpu_custom_call.1} parent=1 // pred_region
      %s26 = ssub.s32 128, 128
      %27 = vsyncadd [#allocation6], %s26
      %s28 = sshll.u32 [#allocation5], 4
      %s29 = int_to_ptr.vmem [resolvable:$true] %s28
      %34 = dma.hbm_to_vmem [thread:$0]  %s0, 128, %s29, [#allocation6], 64, 64, 4
    $region5: #{tpu_custom_call.1} parent=1 // pred_fallthru
      _
    // Predicated region
    $region6: #{tpu_custom_call.1} parent=1 // pred_check
      _
    $region7: #{tpu_custom_call.1} parent=1 // pred_check_branch
      %36 = sbr.rel (0) target = $region9
    $region8: #{tpu_custom_call.1} parent=1 // pred_region
      %s38 = ssub.s32 128, 128
      %39 = vsyncadd [#allocation9], %s38
      %s40 = sshll.u32 [#allocation8], 4
      %s41 = int_to_ptr.vmem [resolvable:$true] %s40
      %46 = dma.hbm_to_vmem [thread:$0]  %s1, 128, %s41, [#allocation9], 64, 64, 4
    $region9: #{tpu_custom_call.1} parent=1 // pred_fallthru
      _
    // Predicated region
    $region10: #{tpu_custom_call.1} parent=1 // pred_check
      _
    $region11: #{tpu_custom_call.1} parent=1 // pred_check_branch
      %48 = sbr.rel (0) target = $region13
    $region12: #{tpu_custom_call.1} parent=1 // pred_region
      %s50 = ssub.s32 128, 128
      %51 = vsyncadd [#allocation9], %s50
      %s52 = sshll.u32 [#allocation10], 4
      %s53 = int_to_ptr.vmem [resolvable:$true] %s52
      %58 = dma.hbm_to_vmem [thread:$0]  %s2, 128, %s53, [#allocation9], 64, 64, 4
    $region13: #{tpu_custom_call.1} parent=1 // pred_fallthru
      _
    // Predicated region
    $region14: #{tpu_custom_call.1} parent=1 // pred_check
      _
    $region15: #{tpu_custom_call.1} parent=1 // pred_check_branch
      %60 = sbr.rel (0) target = $region17
    $region16: #{tpu_custom_call.1} parent=1 // pred_region
      %s62 = ssub.s32 512, 512
      %63 = vsyncadd [#allocation12], %s62
      %s64 = sshll.u32 [#allocation11], 4
      %s65 = int_to_ptr.vmem [resolvable:$true] %s64
      %70 = dma.hbm_to_vmem [thread:$0]  %s3, 512, %s65, [#allocation12], 128, 128, 8
    $region17: #{tpu_custom_call.1} parent=1 // pred_fallthru
      _
    // Predicated region
    $region18: #{tpu_custom_call.1} parent=1 // pred_check
      _
    $region19: #{tpu_custom_call.1} parent=1 // pred_check_branch
      %72 = sbr.rel (0) target = $region21
    $region20: #{tpu_custom_call.1} parent=1 // pred_region
      %s74 = ssub.s32 512, 512
      %75 = vsyncadd [#allocation12], %s74
      %s76 = sshll.u32 [#allocation13], 4
      %s77 = int_to_ptr.vmem [resolvable:$true] %s76
      %82 = dma.hbm_to_vmem [thread:$0]  %s4, 512, %s77, [#allocation12], 128, 128, 8
    $region21: #{tpu_custom_call.1} parent=1 // pred_fallthru
      _
    // Predicated region
    $region22: #{tpu_custom_call.1} parent=1 // pred_check
      _
    $region23: #{tpu_custom_call.1} parent=1 // pred_check_branch
      %84 = sbr.rel (0) target = $region25
    $region24: #{tpu_custom_call.1} parent=1 // pred_region
      %s86 = ssub.s32 512, 512
      %87 = vsyncadd [#allocation15], %s86
      %s88 = sshll.u32 [#allocation14], 4
      %s89 = int_to_ptr.vmem [resolvable:$true] %s88
      %94 = dma.hbm_to_vmem [thread:$0]  %s5, 512, %s89, [#allocation15], 128, 128, 8
    $region25: #{tpu_custom_call.1} parent=1 // pred_fallthru
      _
    // Predicated region
    $region26: #{tpu_custom_call.1} parent=1 // pred_check
      _
    $region27: #{tpu_custom_call.1} parent=1 // pred_check_branch
      %96 = sbr.rel (0) target = $region29
    $region28: #{tpu_custom_call.1} parent=1 // pred_region
      _
    $region29: #{tpu_custom_call.1} parent=1 // pred_fallthru
      _
    // Predicated region
    $region30: #{tpu_custom_call.1} parent=1 // pred_check
      _
    $region31: #{tpu_custom_call.1} parent=1 // pred_check_branch
      %98 = sbr.rel (0) target = $region33
    $region32: #{tpu_custom_call.1} parent=1 // pred_region
      _
    $region33: #{tpu_custom_call.1} parent=1 // pred_fallthru
      _
    // Predicated region
    $region34: #{tpu_custom_call.1} parent=1 // pred_check
      _
    $region35: #{tpu_custom_call.1} parent=1 // pred_check_branch
      %100 = sbr.rel (0) target = $region37
    $region36: #{tpu_custom_call.1} parent=1 // pred_region
      _
    $region37: #{tpu_custom_call.1} parent=1 // pred_fallthru
      _
    // Predicated region
    $region38: #{tpu_custom_call.1} parent=1 // pred_check
      _
    $region39: #{tpu_custom_call.1} parent=1 // pred_check_branch
      %102 = sbr.rel (0) target = $region41
    $region40: #{tpu_custom_call.1} parent=1 // pred_region
      %103 = dma.done [#allocation6], 128
    $region41: #{tpu_custom_call.1} parent=1 // pred_fallthru
      _
    // Predicated region
    $region42: #{tpu_custom_call.1} parent=1 // pred_check
      _
    $region43: #{tpu_custom_call.1} parent=1 // pred_check_branch
      %105 = sbr.rel (0) target = $region45
    $region44: #{tpu_custom_call.1} parent=1 // pred_region
      %106 = dma.done [#allocation9], 128
    $region45: #{tpu_custom_call.1} parent=1 // pred_fallthru
      _
    // Predicated region
    $region46: #{tpu_custom_call.1} parent=1 // pred_check
      _
    $region47: #{tpu_custom_call.1} parent=1 // pred_check_branch
      %108 = sbr.rel (0) target = $region49
    $region48: #{tpu_custom_call.1} parent=1 // pred_region
      %109 = dma.done [#allocation9], 128
    $region49: #{tpu_custom_call.1} parent=1 // pred_fallthru
      _
    // Predicated region
    $region50: #{tpu_custom_call.1} parent=1 // pred_check
      _
    $region51: #{tpu_custom_call.1} parent=1 // pred_check_branch
      %111 = sbr.rel (0) target = $region53
    $region52: #{tpu_custom_call.1} parent=1 // pred_region
      %112 = dma.done [#allocation12], 512
    $region53: #{tpu_custom_call.1} parent=1 // pred_fallthru
      _
    // Predicated region
    $region54: #{tpu_custom_call.1} parent=1 // pred_check
      _
    $region55: #{tpu_custom_call.1} parent=1 // pred_check_branch
      %114 = sbr.rel (0) target = $region57
    $region56: #{tpu_custom_call.1} parent=1 // pred_region
      %115 = dma.done [#allocation12], 512
    $region57: #{tpu_custom_call.1} parent=1 // pred_fallthru
      _
    // Predicated region
    $region58: #{tpu_custom_call.1} parent=1 // pred_check
      _
    $region59: #{tpu_custom_call.1} parent=1 // pred_check_branch
      %117 = sbr.rel (0) target = $region61
    $region60: #{tpu_custom_call.1} parent=1 // pred_region
      %118 = dma.done [#allocation15], 512
    $region61: #{tpu_custom_call.1} parent=1 // pred_fallthru
      _
    %p119 = scmp.eq.s32.totalorder 0, 0
    // Predicated region
    $region62: #{tpu_custom_call.1} parent=1 // pred_check
      %p120 = pneg %p119
    $region63: #{tpu_custom_call.1} parent=1 // pred_check_branch
      %122 = sbr.rel (%p120) target = $region65
    $region64: #{tpu_custom_call.1} parent=1 // pred_region
      %vm123 = vcmask 254976
      %124 = vst.msk [vmem:[#allocation2] sm:$0x3] %vm123, 0.0
      %125 = vst.msk [vmem:[#allocation3] sm:$0x3] %vm123, 0.0
      %126 = vst.msk [vmem:[#allocation4] sm:$0x3] %vm123, 0.0
    $region65: #{tpu_custom_call.1} parent=1 // pred_fallthru
      _
    %v127 = vld [vmem:[#allocation2] sm:$0x3]
    %v128 = vld [vmem:[#allocation5] sm:$0xf]
    %v129 = vld [vmem:[#allocation5 + $0x4] sm:$0xf]
    %v130 = vunpack.c.l.bf16 %v128
    %v131 = vunpack.c.l.bf16 %v129
    %vm132 = vcmask 261120
    %v133 = vsel %vm132, %v130, 0.0
    %v134 = vrot.slane %v133, 4
    %v135 = vadd.f32 %v133, %v134
    %v136 = vrot.slane %v135, 2
    %v137 = vadd.f32 %v135, %v136
    %v138 = vrot.slane %v137, 1
    %v139 = vadd.f32 %v137, %v138
    %v140 = vsel %vm132, %v131, 0.0
    %v141 = vrot.slane %v140, 4
    %v142 = vadd.f32 %v140, %v141
    %v143 = vrot.slane %v142, 2
    %v144 = vadd.f32 %v142, %v143
    %v145 = vrot.slane %v144, 1
    %v146 = vadd.f32 %v144, %v145
    %vm149 = vcmask 1041409
    %v150 = vsel %vm149, %v146, %v139
    %v152 = vadd.f32 %v127, %v150
    %vm153 = vcmask 254976
    %154 = vst.msk [vmem:[#allocation2] sm:$0x3] %vm153, %v152
    %v155 = vld [vmem:[#allocation3] sm:$0x3]
    %v156 = vld [vmem:[#allocation8] sm:$0xf]
    %v157 = vld [vmem:[#allocation8 + $0x4] sm:$0xf]
    %v158 = vunpack.c.l.bf16 %v156
    %v159 = vunpack.c.l.bf16 %v157
    %v160 = vsel %vm132, %v158, 0.0
    %v161 = vrot.slane %v160, 4
    %v162 = vadd.f32 %v160, %v161
    %v163 = vrot.slane %v162, 2
    %v164 = vadd.f32 %v162, %v163
    %v165 = vrot.slane %v164, 1
    %v166 = vadd.f32 %v164, %v165
    %v167 = vsel %vm132, %v159, 0.0
    %v168 = vrot.slane %v167, 4
    %v169 = vadd.f32 %v167, %v168
    %v170 = vrot.slane %v169, 2
    %v171 = vadd.f32 %v169, %v170
    %v172 = vrot.slane %v171, 1
    %v173 = vadd.f32 %v171, %v172
    %v176 = vsel %vm149, %v173, %v166
    %v178 = vadd.f32 %v155, %v176
    %179 = vst.msk [vmem:[#allocation3] sm:$0x3] %vm153, %v178
    %v180 = vld [vmem:[#allocation4] sm:$0x3]
    %v181 = vld [vmem:[#allocation10] sm:$0xf]
    %v182 = vld [vmem:[#allocation10 + $0x4] sm:$0xf]
    %v183 = vunpack.c.l.bf16 %v181
    %v184 = vunpack.c.l.bf16 %v182
    %v185 = vsel %vm132, %v183, 0.0
    %v186 = vrot.slane %v185, 4
    %v187 = vadd.f32 %v185, %v186
    %v188 = vrot.slane %v187, 2
    %v189 = vadd.f32 %v187, %v188
    %v190 = vrot.slane %v189, 1
    %v191 = vadd.f32 %v189, %v190
    %v192 = vsel %vm132, %v184, 0.0
    %v193 = vrot.slane %v192, 4
    %v194 = vadd.f32 %v192, %v193
    %v195 = vrot.slane %v194, 2
    %v196 = vadd.f32 %v194, %v195
    %v197 = vrot.slane %v196, 1
    %v198 = vadd.f32 %v196, %v197
    %v201 = vsel %vm149, %v198, %v191
    %v203 = vadd.f32 %v180, %v201
    %204 = vst.msk [vmem:[#allocation4] sm:$0x3] %vm153, %v203
    // Predicated region
    $region66: #{tpu_custom_call.1} parent=1 // pred_check
      %p205 = pneg %p119
    $region67: #{tpu_custom_call.1} parent=1 // pred_check_branch
      %207 = sbr.rel (%p205) target = $region69
    $region68: #{tpu_custom_call.1} parent=1 // pred_region
      %v208 = vld [vmem:[#allocation2] sm:$0x3]
      %v209 = vmul.f32 %v208, 0.125
      %v210 = vsel %vm153, %v209, 0.0
      %v211 = vrot.slane %v210, 4
      %v212 = vadd.f32 %v210, %v211
      %v213 = vrot.slane %v212, 2
      %v214 = vadd.f32 %v212, %v213
      %v215 = vrot.slane %v214, 1
      %v216 = vadd.f32 %v214, %v215
      %v217 = vrcp.pop 2.0
      %v218 = vmul.f32 %v216, %v217
      %v219 = vsub.f32 %v209, %v218
      %v220 = vmul.f32 %v219, %v219
      %v221 = vsel %vm153, %v220, 0.0
      %v222 = vrot.slane %v221, 4
      %v223 = vadd.f32 %v221, %v222
      %v224 = vrot.slane %v223, 2
      %v225 = vadd.f32 %v223, %v224
      %v226 = vrot.slane %v225, 1
      %v227 = vadd.f32 %v225, %v226
      %v228 = vmul.f32 %v227, %v217
      %v229 = vadd.f32 %v228, 1e-06
      %v230 = vrsqrt.pop %v229
      %v231 = vmul.f32 %v219, %v230
      %v232 = vld [vmem:[#allocation11] sm:$0xff]
      %v233 = vld [vmem:[#allocation11 + $0x8] sm:$0xff]
      %v234 = vld [vmem:[#allocation11 + $0x10] sm:$0xff]
      %v235 = vld [vmem:[#allocation11 + $0x18] sm:$0xff]
      %v236 = vld [vmem:[%s6] sm:$0x1]
      %v238 = vlaneseq
      %v239 = vshrl.u32 %v238, 7
      %v240 = vsub.s32 0, %v239
      %v241 = vrot.slane %v236, %v240
      %v244 = vsel %vm132, %v231, 0
      %246 = vmatprep.subr.mxu0 0.0
      %247 = vmatpush1.msra.mxu0 0.0
      %248 = vmatprep.subr.mxu0 0.0
      %249 = vmatpush1.msra.mxu0 0.0
      %250 = vmatprep.subr.mxu0 0.0
      %251 = vmatpush1.msra.mxu0 0.0
      %252 = vmatprep.subr.mxu0 0.0
      %253 = vmatpush1.msra.mxu0 0.0
      %254 = vmatprep.subr.mxu0 0.0
      %255 = vmatpush1.msra.mxu0 0.0
      %256 = vmatprep.subr.mxu0 0.0
      %257 = vmatpush1.msra.mxu0 0.0
      %258 = vmatprep.subr.mxu0 0.0
      %259 = vmatpush1.msra.mxu0 0.0
      %260 = vmatprep.subr.mxu0 0.0
      %261 = vmatpush1.msra.mxu0 0.0
      %262 = vmatprep.subr.mxu0 0.0
      %263 = vmatpush1.msra.mxu0 0.0
      %264 = vmatprep.subr.mxu0 0.0
      %265 = vmatpush1.msra.mxu0 0.0
      %266 = vmatprep.subr.mxu0 0.0
      %267 = vmatpush1.msra.mxu0 0.0
      %268 = vmatprep.subr.mxu0 0.0
      %269 = vmatpush1.msra.mxu0 0.0
      %270 = vmatprep.subr.mxu0 0.0
      %271 = vmatpush1.msra.mxu0 %v235
      %272 = vmatprep.subr.mxu0 0.0
      %273 = vmatpush1.msra.mxu0 %v234
      %274 = vmatprep.subr.mxu0 0.0
      %275 = vmatpush1.msra.mxu0 %v233
      %276 = vmatprep.subr.mxu0 0.0
      %277 = vmatpush1.msra.mxu0 %v232
      %278 = vmatprep.subr.mxu0 0.0
      %279 = vmatpush2.msra.mxu0 0.0
      %280 = vmatprep.subr.mxu0 0.0
      %281 = vmatpush2.msra.mxu0 0.0
      %282 = vmatprep.subr.mxu0 0.0
      %283 = vmatpush2.msra.mxu0 0.0
      %284 = vmatprep.subr.mxu0 0.0
      %285 = vmatpush2.msra.mxu0 0.0
      %286 = vmatprep.subr.mxu0 0.0
      %287 = vmatpush2.msra.mxu0 0.0
      %288 = vmatprep.subr.mxu0 0.0
      %289 = vmatpush2.msra.mxu0 0.0
      %290 = vmatprep.subr.mxu0 0.0
      %291 = vmatpush2.msra.mxu0 0.0
      %292 = vmatprep.subr.mxu0 0.0
      %293 = vmatpush2.msra.mxu0 0.0
      %294 = vmatprep.subr.mxu0 0.0
      %295 = vmatpush2.msra.mxu0 0.0
      %296 = vmatprep.subr.mxu0 0.0
      %297 = vmatpush2.msra.mxu0 0.0
      %298 = vmatprep.subr.mxu0 0.0
      %299 = vmatpush2.msra.mxu0 0.0
      %300 = vmatprep.subr.mxu0 0.0
      %301 = vmatpush2.msra.mxu0 0.0
      %302 = vmatprep.subr.mxu0 0.0
      %303 = vmatpush2.msra.mxu0 0.0
      %304 = vmatprep.subr.mxu0 0.0
      %305 = vmatpush2.msra.mxu0 0.0
      %306 = vmatprep.subr.mxu0 0.0
      %307 = vmatpush2.msra.mxu0 0.0
      %308 = vmatprep.subr.mxu0 0.0
      %309 = vmatpush2.msra.mxu0 0.0
      %310 = vmatprep.mubr.f32.mxu0 0.0
      %311 = vmatmul.mubr.f32.gmra.mxu0 %v244
      %v312 = vpop.f32.mrf.mxu0
      %v313 = vadd.f32 %v241, %v312
      %v314 = vpop.f32.mrf.mxu0
      %315 = vdwg.mxu0
      %316 = vst [vmem:[#allocation16] sm:$0x3] %v313
      %v317 = vld [vmem:[#allocation3] sm:$0x3]
      %v318 = vmul.f32 %v317, 0.125
      %v319 = vsel %vm153, %v318, 0.0
      %v320 = vrot.slane %v319, 4
      %v321 = vadd.f32 %v319, %v320
      %v322 = vrot.slane %v321, 2
      %v323 = vadd.f32 %v321, %v322
      %v324 = vrot.slane %v323, 1
      %v325 = vadd.f32 %v323, %v324
      %v326 = vmul.f32 %v325, %v217
      %v327 = vsub.f32 %v318, %v326
      %v328 = vmul.f32 %v327, %v327
      %v329 = vsel %vm153, %v328, 0.0
      %v330 = vrot.slane %v329, 4
      %v331 = vadd.f32 %v329, %v330
      %v332 = vrot.slane %v331, 2
      %v333 = vadd.f32 %v331, %v332
      %v334 = vrot.slane %v333, 1
      %v335 = vadd.f32 %v333, %v334
      %v336 = vmul.f32 %v335, %v217
      %v337 = vadd.f32 %v336, 1e-06
      %v338 = vrsqrt.pop %v337
      %v339 = vmul.f32 %v327, %v338
      %v340 = vld [vmem:[#allocation13] sm:$0xff]
      %v341 = vld [vmem:[#allocation13 + $0x8] sm:$0xff]
      %v342 = vld [vmem:[#allocation13 + $0x10] sm:$0xff]
      %v343 = vld [vmem:[#allocation13 + $0x18] sm:$0xff]
      %v344 = vld [vmem:[%s7] sm:$0x1]
      %v346 = vlaneseq
      %v347 = vshrl.u32 %v346, 7
      %v348 = vsub.s32 0, %v347
      %v349 = vrot.slane %v344, %v348
      %v352 = vsel %vm132, %v339, 0
      %354 = vmatprep.subr.mxu0 0.0
      %355 = vmatpush1.msra.mxu0 0.0
      %356 = vmatprep.subr.mxu0 0.0
      %357 = vmatpush1.msra.mxu0 0.0
      %358 = vmatprep.subr.mxu0 0.0
      %359 = vmatpush1.msra.mxu0 0.0
      %360 = vmatprep.subr.mxu0 0.0
      %361 = vmatpush1.msra.mxu0 0.0
      %362 = vmatprep.subr.mxu0 0.0
      %363 = vmatpush1.msra.mxu0 0.0
      %364 = vmatprep.subr.mxu0 0.0
      %365 = vmatpush1.msra.mxu0 0.0
      %366 = vmatprep.subr.mxu0 0.0
      %367 = vmatpush1.msra.mxu0 0.0
      %368 = vmatprep.subr.mxu0 0.0
      %369 = vmatpush1.msra.mxu0 0.0
      %370 = vmatprep.subr.mxu0 0.0
      %371 = vmatpush1.msra.mxu0 0.0
      %372 = vmatprep.subr.mxu0 0.0
      %373 = vmatpush1.msra.mxu0 0.0
      %374 = vmatprep.subr.mxu0 0.0
      %375 = vmatpush1.msra.mxu0 0.0
      %376 = vmatprep.subr.mxu0 0.0
      %377 = vmatpush1.msra.mxu0 0.0
      %378 = vmatprep.subr.mxu0 0.0
      %379 = vmatpush1.msra.mxu0 %v343
      %380 = vmatprep.subr.mxu0 0.0
      %381 = vmatpush1.msra.mxu0 %v342
      %382 = vmatprep.subr.mxu0 0.0
      %383 = vmatpush1.msra.mxu0 %v341
      %384 = vmatprep.subr.mxu0 0.0
      %385 = vmatpush1.msra.mxu0 %v340
      %386 = vmatprep.subr.mxu0 0.0
      %387 = vmatpush2.msra.mxu0 0.0
      %388 = vmatprep.subr.mxu0 0.0
      %389 = vmatpush2.msra.mxu0 0.0
      %390 = vmatprep.subr.mxu0 0.0
      %391 = vmatpush2.msra.mxu0 0.0
      %392 = vmatprep.subr.mxu0 0.0
      %393 = vmatpush2.msra.mxu0 0.0
      %394 = vmatprep.subr.mxu0 0.0
      %395 = vmatpush2.msra.mxu0 0.0
      %396 = vmatprep.subr.mxu0 0.0
      %397 = vmatpush2.msra.mxu0 0.0
      %398 = vmatprep.subr.mxu0 0.0
      %399 = vmatpush2.msra.mxu0 0.0
      %400 = vmatprep.subr.mxu0 0.0
      %401 = vmatpush2.msra.mxu0 0.0
      %402 = vmatprep.subr.mxu0 0.0
      %403 = vmatpush2.msra.mxu0 0.0
      %404 = vmatprep.subr.mxu0 0.0
      %405 = vmatpush2.msra.mxu0 0.0
      %406 = vmatprep.subr.mxu0 0.0
      %407 = vmatpush2.msra.mxu0 0.0
      %408 = vmatprep.subr.mxu0 0.0
      %409 = vmatpush2.msra.mxu0 0.0
      %410 = vmatprep.subr.mxu0 0.0
      %411 = vmatpush2.msra.mxu0 0.0
      %412 = vmatprep.subr.mxu0 0.0
      %413 = vmatpush2.msra.mxu0 0.0
      %414 = vmatprep.subr.mxu0 0.0
      %415 = vmatpush2.msra.mxu0 0.0
      %416 = vmatprep.subr.mxu0 0.0
      %417 = vmatpush2.msra.mxu0 0.0
      %418 = vmatprep.mubr.f32.mxu0 0.0
      %419 = vmatmul.mubr.f32.gmra.mxu0 %v352
      %v420 = vpop.f32.mrf.mxu0
      %v421 = vadd.f32 %v349, %v420
      %v422 = vpop.f32.mrf.mxu0
      %423 = vdwg.mxu0
      %424 = vst [vmem:[#allocation17] sm:$0x3] %v421
      %v425 = vld [vmem:[#allocation4] sm:$0x3]
      %v426 = vmul.f32 %v425, 0.125
      %v427 = vsel %vm153, %v426, 0.0
      %v428 = vrot.slane %v427, 4
      %v429 = vadd.f32 %v427, %v428
      %v430 = vrot.slane %v429, 2
      %v431 = vadd.f32 %v429, %v430
      %v432 = vrot.slane %v431, 1
      %v433 = vadd.f32 %v431, %v432
      %v434 = vmul.f32 %v433, %v217
      %v435 = vsub.f32 %v426, %v434
      %v436 = vmul.f32 %v435, %v435
      %v437 = vsel %vm153, %v436, 0.0
      %v438 = vrot.slane %v437, 4
      %v439 = vadd.f32 %v437, %v438
      %v440 = vrot.slane %v439, 2
      %v441 = vadd.f32 %v439, %v440
      %v442 = vrot.slane %v441, 1
      %v443 = vadd.f32 %v441, %v442
      %v444 = vmul.f32 %v443, %v217
      %v445 = vadd.f32 %v444, 1e-06
      %v446 = vrsqrt.pop %v445
      %v447 = vmul.f32 %v435, %v446
      %v448 = vld [vmem:[#allocation14] sm:$0xff]
      %v449 = vld [vmem:[#allocation14 + $0x8] sm:$0xff]
      %v450 = vld [vmem:[#allocation14 + $0x10] sm:$0xff]
      %v451 = vld [vmem:[#allocation14 + $0x18] sm:$0xff]
      %v452 = vld [vmem:[%s8] sm:$0x1]
      %v454 = vlaneseq
      %v455 = vshrl.u32 %v454, 7
      %v456 = vsub.s32 0, %v455
      %v457 = vrot.slane %v452, %v456
      %v460 = vsel %vm132, %v447, 0
      %462 = vmatprep.subr.mxu0 0.0
      %463 = vmatpush1.msra.mxu0 0.0
      %464 = vmatprep.subr.mxu0 0.0
      %465 = vmatpush1.msra.mxu0 0.0
      %466 = vmatprep.subr.mxu0 0.0
      %467 = vmatpush1.msra.mxu0 0.0
      %468 = vmatprep.subr.mxu0 0.0
      %469 = vmatpush1.msra.mxu0 0.0
      %470 = vmatprep.subr.mxu0 0.0
      %471 = vmatpush1.msra.mxu0 0.0
      %472 = vmatprep.subr.mxu0 0.0
      %473 = vmatpush1.msra.mxu0 0.0
      %474 = vmatprep.subr.mxu0 0.0
      %475 = vmatpush1.msra.mxu0 0.0
      %476 = vmatprep.subr.mxu0 0.0
      %477 = vmatpush1.msra.mxu0 0.0
      %478 = vmatprep.subr.mxu0 0.0
      %479 = vmatpush1.msra.mxu0 0.0
      %480 = vmatprep.subr.mxu0 0.0
      %481 = vmatpush1.msra.mxu0 0.0
      %482 = vmatprep.subr.mxu0 0.0
      %483 = vmatpush1.msra.mxu0 0.0
      %484 = vmatprep.subr.mxu0 0.0
      %485 = vmatpush1.msra.mxu0 0.0
      %486 = vmatprep.subr.mxu0 0.0
      %487 = vmatpush1.msra.mxu0 %v451
      %488 = vmatprep.subr.mxu0 0.0
      %489 = vmatpush1.msra.mxu0 %v450
      %490 = vmatprep.subr.mxu0 0.0
      %491 = vmatpush1.msra.mxu0 %v449
      %492 = vmatprep.subr.mxu0 0.0
      %493 = vmatpush1.msra.mxu0 %v448
      %494 = vmatprep.subr.mxu0 0.0
      %495 = vmatpush2.msra.mxu0 0.0
      %496 = vmatprep.subr.mxu0 0.0
      %497 = vmatpush2.msra.mxu0 0.0
      %498 = vmatprep.subr.mxu0 0.0
      %499 = vmatpush2.msra.mxu0 0.0
      %500 = vmatprep.subr.mxu0 0.0
      %501 = vmatpush2.msra.mxu0 0.0
      %502 = vmatprep.subr.mxu0 0.0
      %503 = vmatpush2.msra.mxu0 0.0
      %504 = vmatprep.subr.mxu0 0.0
      %505 = vmatpush2.msra.mxu0 0.0
      %506 = vmatprep.subr.mxu0 0.0
      %507 = vmatpush2.msra.mxu0 0.0
      %508 = vmatprep.subr.mxu0 0.0
      %509 = vmatpush2.msra.mxu0 0.0
      %510 = vmatprep.subr.mxu0 0.0
      %511 = vmatpush2.msra.mxu0 0.0
      %512 = vmatprep.subr.mxu0 0.0
      %513 = vmatpush2.msra.mxu0 0.0
      %514 = vmatprep.subr.mxu0 0.0
      %515 = vmatpush2.msra.mxu0 0.0
      %516 = vmatprep.subr.mxu0 0.0
      %517 = vmatpush2.msra.mxu0 0.0
      %518 = vmatprep.subr.mxu0 0.0
      %519 = vmatpush2.msra.mxu0 0.0
      %520 = vmatprep.subr.mxu0 0.0
      %521 = vmatpush2.msra.mxu0 0.0
      %522 = vmatprep.subr.mxu0 0.0
      %523 = vmatpush2.msra.mxu0 0.0
      %524 = vmatprep.subr.mxu0 0.0
      %525 = vmatpush2.msra.mxu0 0.0
      %526 = vmatprep.mubr.f32.mxu0 0.0
      %527 = vmatmul.mubr.f32.gmra.mxu0 %v460
      %v528 = vpop.f32.mrf.mxu0
      %v529 = vadd.f32 %v457, %v528
      %v530 = vpop.f32.mrf.mxu0
      %531 = vdwg.mxu0
      %532 = vst [vmem:[#allocation19] sm:$0x3] %v529
    $region69: #{tpu_custom_call.1} parent=1 // pred_fallthru
      _
    // Predicated region
    $region70: #{tpu_custom_call.1} parent=1 // pred_check
      _
    $region71: #{tpu_custom_call.1} parent=1 // pred_check_branch
      %534 = sbr.rel (0) target = $region73
    $region72: #{tpu_custom_call.1} parent=1 // pred_region
      %s536 = ssub.s32 32, 32
      %537 = vsyncadd [#allocation7], %s536
      %s539 = sshll.u32 [#allocation16], 4
      %s540 = int_to_ptr.vmem [resolvable:$true] %s539
      %542 = dma.vmem_to_hbm [thread:$0]  %s540, 32, %s9, [#allocation7]
    $region73: #{tpu_custom_call.1} parent=1 // pred_fallthru
      _
    // Predicated region
    $region74: #{tpu_custom_call.1} parent=1 // pred_check
      _
    $region75: #{tpu_custom_call.1} parent=1 // pred_check_branch
      %544 = sbr.rel (0) target = $region77
    $region76: #{tpu_custom_call.1} parent=1 // pred_region
      %s546 = ssub.s32 32, 32
      %547 = vsyncadd [#allocation18], %s546
      %s549 = sshll.u32 [#allocation17], 4
      %s550 = int_to_ptr.vmem [resolvable:$true] %s549
      %552 = dma.vmem_to_hbm [thread:$0]  %s550, 32, %s10, [#allocation18]
    $region77: #{tpu_custom_call.1} parent=1 // pred_fallthru
      _
    // Predicated region
    $region78: #{tpu_custom_call.1} parent=1 // pred_check
      _
    $region79: #{tpu_custom_call.1} parent=1 // pred_check_branch
      %554 = sbr.rel (0) target = $region81
    $region80: #{tpu_custom_call.1} parent=1 // pred_region
      %s556 = ssub.s32 32, 32
      %557 = vsyncadd [#allocation18], %s556
      %s559 = sshll.u32 [#allocation19], 4
      %s560 = int_to_ptr.vmem [resolvable:$true] %s559
      %562 = dma.vmem_to_hbm [thread:$0]  %s560, 32, %s11, [#allocation18]
    $region81: #{tpu_custom_call.1} parent=1 // pred_fallthru
      _
    // Predicated region
    $region82: #{tpu_custom_call.1} parent=1 // pred_check
      _
    $region83: #{tpu_custom_call.1} parent=1 // pred_check_branch
      %564 = sbr.rel (0) target = $region85
    $region84: #{tpu_custom_call.1} parent=1 // pred_region
      %565 = dma.done [#allocation7], 32
    $region85: #{tpu_custom_call.1} parent=1 // pred_fallthru
      _
    // Predicated region
    $region86: #{tpu_custom_call.1} parent=1 // pred_check
      _
    $region87: #{tpu_custom_call.1} parent=1 // pred_check_branch
      %567 = sbr.rel (0) target = $region89
    $region88: #{tpu_custom_call.1} parent=1 // pred_region
      %568 = dma.done [#allocation18], 32
    $region89: #{tpu_custom_call.1} parent=1 // pred_fallthru
      _
    // Predicated region
    $region90: #{tpu_custom_call.1} parent=1 // pred_check
      _
    $region91: #{tpu_custom_call.1} parent=1 // pred_check_branch
      %570 = sbr.rel (0) target = $region93
    $region92: #{tpu_custom_call.1} parent=1 // pred_region
      %571 = dma.done [#allocation18], 32
    $region93: #{tpu_custom_call.1} parent=1 // pred_fallthru
      _
    %572 = vsyncpa [#allocation6], 1
    %573 = vsyncpa [#allocation9], 1
    %574 = vsyncpa [#allocation12], 1
    %575 = vsyncpa [#allocation15], 1
    %576 = vsyncpa [#allocation7], 1
    %577 = vsyncpa [#allocation18], 1

</llo_original>
